<compile_context>
chip_gen: v5e
topology: v5e:2x2
jax: 0.10.0
libtpu: 0.0.40
codegen_flags: <defaults>
</compile_context>

<pallas_src>
import math

import jax
import jax.numpy as jnp
from jax.experimental import pallas as pl
from jax.experimental.pallas import tpu as pltpu


def _round_up(x, m):
    return ((x + m - 1) // m) * m


def _pick_batch_tile(B, max_tile=1024):
    """Batch tile: clamp to B, prefer >=2 tiles (v7x dual-TC), cap for big B."""
    half = _round_up(-(-B // 2), 16)          # ceil(B/2) rounded to bf16 sublane pack
    return max(16, min(max_tile, half))


def _mhd_intermediate_kernel(z_ref, w1_ref, b1_ref, w2_ref, b2_ref, o_ref):
    """Whole 2-layer MLP (+ReLU) for one batch tile, entirely in VMEM.

    z arrives in f32 and is cast to the MXU dtype (bf16) in-register; both
    matmuls accumulate in f32; bias-add / ReLU run in f32 on the VPU.
    """
    z = z_ref[...].astype(w1_ref.dtype)
    h = jnp.dot(z, w1_ref[...], preferred_element_type=jnp.float32)
    h = jnp.maximum(h + b1_ref[...], 0.0)

    out = jnp.dot(h.astype(w2_ref.dtype), w2_ref[...],
                  preferred_element_type=jnp.float32)
    out = jnp.maximum(out + b2_ref[...], 0.0)

    o_ref[...] = out.astype(o_ref.dtype)


def prepare_params(params, *, matmul_dtype=jnp.bfloat16):
    """Pad (lane dim -> multiple of 128) and cast weights ONCE.

    Weights are static across calls; doing this per-forward costs several XLA
    pad/convert ops + HBM round trips around a microsecond-scale kernel.
    Zero padding is exact for this module: padded w cols + zero bias give
    relu(0)=0 in the padded output columns, and padded w2 rows multiply those
    zero columns.
    """
    w1, b1, w2, b2 = params["w1"], params["b1"], params["w2"], params["b2"]
    F, L = w1.shape
    L_pad = _round_up(L, 128)
    return {
        "w1": jnp.pad(w1, ((0, 0), (0, L_pad - L))).astype(matmul_dtype),
        "b1": jnp.pad(b1, ((0, 0), (0, L_pad - L))).astype(jnp.float32),
        "w2": jnp.pad(w2, ((0, L_pad - L), (0, L_pad - L))).astype(matmul_dtype),
        "b2": jnp.pad(b2, ((0, 0), (0, L_pad - L))).astype(jnp.float32),
        "fusion_dim": F,
        "latent_dim": L,
    }


def mhd_intermediate(z, prepared, *, batch_tile=None, out_dtype=jnp.bfloat16):
    """relu(fc2(relu(fc1(z)))) via a single fused Pallas TPU kernel.

    z: (B, fusion_dim) float32 (any B).
    prepared: output of prepare_params() (padded, bf16 weights; f32 biases).
    """
    F = prepared["fusion_dim"]
    L = prepared["latent_dim"]
    w1_p, b1_p = prepared["w1"], prepared["b1"]
    w2_p, b2_p = prepared["w2"], prepared["b2"]
    L_pad = w1_p.shape[1]

    B, Fz = z.shape
    assert Fz == F, f"z feature dim {Fz} != fusion_dim {F}"

    if batch_tile is None:
        batch_tile = _pick_batch_tile(B)
    batch_tile = min(batch_tile, _round_up(B, 16))
    assert batch_tile % 16 == 0, "batch_tile must be a multiple of 16 (bf16 sublane pack)"

    B_pad = _round_up(B, batch_tile)
    # Only the batch axis is padded, and only when needed; z stays f32 and
    # keeps its natural (full) feature dim -> no pre-kernel pad/cast round trip
    # in the common tile-aligned case.
    z_p = z if B_pad == B else jnp.pad(z, ((0, B_pad - B), (0, 0)))

    grid = (B_pad // batch_tile,)

    # Weights/biases: constant block index -> fetched once, resident in VMEM.
    rep = lambda shape: pl.BlockSpec(shape, lambda i: (0, 0))

    out = pl.pallas_call(
        _mhd_intermediate_kernel,
        out_shape=jax.ShapeDtypeStruct((B_pad, L_pad), out_dtype),
        grid_spec=pltpu.PrefetchScalarGridSpec(
            num_scalar_prefetch=0,
            grid=grid,
            in_specs=[
                # z tile: last dim == full array dim (exempt from 128-lane rule)
                pl.BlockSpec((batch_tile, F), lambda i: (i, 0)),
                rep((F, L_pad)),       # w1
                rep((1, L_pad)),       # b1
                rep((L_pad, L_pad)),   # w2
                rep((1, L_pad)),       # b2
            ],
            out_specs=pl.BlockSpec((batch_tile, L_pad), lambda i: (i, 0)),
        ),
        compiler_params=pltpu.CompilerParams(
            dimension_semantics=("parallel",)),
    )(z_p, w1_p, b1_p, w2_p, b2_p)

    return out[:B, :L]


def init_params(key, fusion_dim, latent_dim):
    """PyTorch nn.Linear default init: U(-1/sqrt(fan_in), 1/sqrt(fan_in))."""
    ks = jax.random.split(key, 4)

    def linear(kw, kb, fan_in, fan_out):
        bound = 1.0 / math.sqrt(fan_in)
        w = jax.random.uniform(kw, (fan_in, fan_out), jnp.float32, -bound, bound)
        b = jax.random.uniform(kb, (1, fan_out), jnp.float32, -bound, bound)
        return w, b

    w1, b1 = linear(ks[0], ks[1], fusion_dim, latent_dim)
    w2, b2 = linear(ks[2], ks[3], latent_dim, latent_dim)
    return {"w1": w1, "b1": b1, "w2": w2, "b2": b2}


def reference_forward(z, p, matmul_dtype=jnp.float32):
    """Plain-JAX reference matching the PyTorch forward.

    matmul_dtype mirrors the kernel's MXU input precision (bf16) so the kernel
    can be validated with a tight tolerance.  The f32 PyTorch module itself
    matches to ~1e-2 (explicit bf16-MXU accuracy decision).
    """
    h = jnp.dot(z.astype(matmul_dtype), p["w1"].astype(matmul_dtype),
                preferred_element_type=jnp.float32) + p["b1"]
    h = jnp.maximum(h, 0.0)
    out = jnp.dot(h.astype(matmul_dtype), p["w2"].astype(matmul_dtype),
                  preferred_element_type=jnp.float32) + p["b2"]
    return jnp.maximum(out, 0.0)


if __name__ == "__main__":
    key = jax.random.PRNGKey(0)
    k_z, k_p = jax.random.split(key)

    fusion_dim, latent_dim = 48, 32
    batch = 8

    params = init_params(k_p, fusion_dim, latent_dim)
    prepared = prepare_params(params)           # pad + bf16-cast weights ONCE

    # --- small batch: tile clamps to 16 (not 256), bf16 output -------------
    z = jax.random.normal(k_z, (batch, fusion_dim), dtype=jnp.float32)
    out = jax.block_until_ready(mhd_intermediate(z, prepared))
    ref = reference_forward(z, params, matmul_dtype=jnp.bfloat16)
    ref_q = ref.astype(jnp.bfloat16).astype(jnp.float32)   # match bf16 output quantization
    assert out.shape == (batch, latent_dim)
    assert out.dtype == jnp.bfloat16
    assert jnp.allclose(out.astype(jnp.float32), ref_q, atol=1e-2, rtol=1e-2), \
        float(jnp.max(jnp.abs(out.astype(jnp.float32) - ref_q)))

    # --- f32 output path ----------------------------------------------------
    out_f32 = jax.block_until_ready(
        mhd_intermediate(z, prepared, out_dtype=jnp.float32))
    assert out_f32.dtype == jnp.float32
    assert jnp.allclose(out_f32, ref, atol=2e-3, rtol=2e-3), \
        float(jnp.max(jnp.abs(out_f32 - ref)))

    # --- non-tile-aligned larger batch: auto tile = 160 -> 2-tile "parallel"
    # grid (v7x dual-TC split), batch padded 300 -> 320 only. ------------------
    z_big = jax.random.normal(jax.random.PRNGKey(1), (300, fusion_dim),
                              dtype=jnp.float32)
    out_big = jax.block_until_ready(mhd_intermediate(z_big, prepared))
    ref_big = reference_forward(z_big, params, matmul_dtype=jnp.bfloat16)
    ref_big_q = ref_big.astype(jnp.bfloat16).astype(jnp.float32)
    assert out_big.shape == (300, latent_dim)
    assert jnp.allclose(out_big.astype(jnp.float32), ref_big_q,
                        atol=1e-2, rtol=1e-2), \
        float(jnp.max(jnp.abs(out_big.astype(jnp.float32) - ref_big_q)))

    print("KERNEL_OK")
</pallas_src>

<mosaic_0001>
module attributes {stable_mosaic.version = 11 : i64} {
  func.func @_mhd_intermediate_kernel(%arg0: i32, %arg1: memref<16x48xf32, #tpu.memory_space<vmem>>, %arg2: memref<48x128xbf16, #tpu.memory_space<vmem>>, %arg3: memref<1x128xf32, #tpu.memory_space<vmem>>, %arg4: memref<128x128xbf16, #tpu.memory_space<vmem>>, %arg5: memref<1x128xf32, #tpu.memory_space<vmem>>, %arg6: memref<16x128xbf16, #tpu.memory_space<vmem>>) attributes {dimension_semantics = [#tpu.dimension_semantics<parallel>], iteration_bounds = array<i64: 1>, scalar_prefetch = 0 : i64, scratch_operands = 0 : i64, tpu.core_type = #tpu.core_type<tc>, window_params = [{transform_indices = @transform_0, window_bounds = array<i64: 16, 48>}, {pipeline_mode = #tpu.pipeline_mode<synchronous>, transform_indices = @transform_1, window_bounds = array<i64: 48, 128>}, {pipeline_mode = #tpu.pipeline_mode<synchronous>, transform_indices = @transform_2, window_bounds = array<i64: 1, 128>}, {pipeline_mode = #tpu.pipeline_mode<synchronous>, transform_indices = @transform_3, window_bounds = array<i64: 128, 128>}, {pipeline_mode = #tpu.pipeline_mode<synchronous>, transform_indices = @transform_4, window_bounds = array<i64: 1, 128>}, {transform_indices = @transform_5, window_bounds = array<i64: 16, 128>}]} {
    %c0 = arith.constant 0 : index
    %c0_0 = arith.constant 0 : index
    %0 = vector.load %arg1[%c0, %c0_0] : memref<16x48xf32, #tpu.memory_space<vmem>>, vector<16x48xf32>
    %1 = arith.truncf %0 : vector<16x48xf32> to vector<16x48xbf16>
    %c0_1 = arith.constant 0 : index
    %c0_2 = arith.constant 0 : index
    %2 = vector.load %arg2[%c0_1, %c0_2] : memref<48x128xbf16, #tpu.memory_space<vmem>>, vector<48x128xbf16>
    %cst = arith.constant dense<0.000000e+00> : vector<16x128xf32>
    %3 = tpu.matmul %1, %2, %cst {dimension_numbers = #tpu.dot_dimension_numbers<[1], [0], [0], [1], [0, 0, 1, 1], [], []>} : vector<16x48xbf16>, vector<48x128xbf16>, vector<16x128xf32> -> vector<16x128xf32>
    %c0_3 = arith.constant 0 : index
    %c0_4 = arith.constant 0 : index
    %4 = vector.load %arg3[%c0_3, %c0_4] : memref<1x128xf32, #tpu.memory_space<vmem>>, vector<1x128xf32>
    %5 = vector.broadcast %4 : vector<1x128xf32> to vector<16x128xf32>
    %6 = arith.addf %3, %5 : vector<16x128xf32>
    %cst_5 = arith.constant 0.000000e+00 : f32
    %7 = vector.broadcast %cst_5 : f32 to vector<16x128xf32>
    %8 = arith.maximumf %6, %7 : vector<16x128xf32>
    %9 = arith.truncf %8 : vector<16x128xf32> to vector<16x128xbf16>
    %c0_6 = arith.constant 0 : index
    %c0_7 = arith.constant 0 : index
    %10 = vector.load %arg4[%c0_6, %c0_7] : memref<128x128xbf16, #tpu.memory_space<vmem>>, vector<128x128xbf16>
    %cst_8 = arith.constant dense<0.000000e+00> : vector<16x128xf32>
    %11 = tpu.matmul %9, %10, %cst_8 {dimension_numbers = #tpu.dot_dimension_numbers<[1], [0], [0], [1], [0, 0, 1, 1], [], []>} : vector<16x128xbf16>, vector<128x128xbf16>, vector<16x128xf32> -> vector<16x128xf32>
    %c0_9 = arith.constant 0 : index
    %c0_10 = arith.constant 0 : index
    %12 = vector.load %arg5[%c0_9, %c0_10] : memref<1x128xf32, #tpu.memory_space<vmem>>, vector<1x128xf32>
    %13 = vector.broadcast %12 : vector<1x128xf32> to vector<16x128xf32>
    %14 = arith.addf %11, %13 : vector<16x128xf32>
    %cst_11 = arith.constant 0.000000e+00 : f32
    %15 = vector.broadcast %cst_11 : f32 to vector<16x128xf32>
    %16 = arith.maximumf %14, %15 : vector<16x128xf32>
    %17 = arith.truncf %16 : vector<16x128xf32> to vector<16x128xbf16>
    %c0_12 = arith.constant 0 : index
    %c0_13 = arith.constant 0 : index
    %18 = vector.load %arg6[%c0_12, %c0_13] : memref<16x128xbf16, #tpu.memory_space<vmem>>, vector<16x128xbf16>
    tpu.vector_store %arg6[%c0_12, %c0_13], %17 {strides = array<i32>} : memref<16x128xbf16, #tpu.memory_space<vmem>>, vector<16x128xbf16>,
    return
  }
  func.func @transform_0(%arg0: i32) -> (i32, i32) {
    %c0_i32 = arith.constant 0 : i32
    %c0_i32_0 = arith.constant 0 : i32
    return %arg0, %c0_i32 : i32, i32
  }
  func.func @transform_1(%arg0: i32) -> (i32, i32) {
    %c0_i32 = arith.constant 0 : i32
    %c0_i32_0 = arith.constant 0 : i32
    %c0_i32_1 = arith.constant 0 : i32
    return %c0_i32, %c0_i32_0 : i32, i32
  }
  func.func @transform_2(%arg0: i32) -> (i32, i32) {
    %c0_i32 = arith.constant 0 : i32
    %c0_i32_0 = arith.constant 0 : i32
    %c0_i32_1 = arith.constant 0 : i32
    return %c0_i32, %c0_i32_0 : i32, i32
  }
  func.func @transform_3(%arg0: i32) -> (i32, i32) {
    %c0_i32 = arith.constant 0 : i32
    %c0_i32_0 = arith.constant 0 : i32
    %c0_i32_1 = arith.constant 0 : i32
    return %c0_i32, %c0_i32_0 : i32, i32
  }
  func.func @transform_4(%arg0: i32) -> (i32, i32) {
    %c0_i32 = arith.constant 0 : i32
    %c0_i32_0 = arith.constant 0 : i32
    %c0_i32_1 = arith.constant 0 : i32
    return %c0_i32, %c0_i32_0 : i32, i32
  }
  func.func @transform_5(%arg0: i32) -> (i32, i32) {
    %c0_i32 = arith.constant 0 : i32
    %c0_i32_0 = arith.constant 0 : i32
    return %arg0, %c0_i32 : i32, i32
  }
}

</mosaic_0001>

<llo_original>
// kernel: tpu_custom_call.1
$region0: #{tpu_custom_call.1}
  #allocation0 [shape = 'u32[]', space=smem, size = 0x4, offset = 0x4, fixed_abs, tag = 'smem constant byte address 0x4 - core index']
  #allocation1 [shape = 'u32[72,128]{1,0:T(1,128)}', space=vmem, size = 0x9000, scoped, tag = 'internal scratch']
  %s0 = inlined_call_operand.hbm [shape: f32[16,48], index: 0, kind: input, shape index: {}]
  %s1 = inlined_call_operand.hbm [shape: bf16[48,128], index: 1, kind: input, shape index: {}]
  %s2 = inlined_call_operand.vmem [shape: f32[1,128], index: 2, kind: input, shape index: {}]
  %s3 = inlined_call_operand.hbm [shape: bf16[128,128], index: 3, kind: input, shape index: {}]
  %s4 = inlined_call_operand.vmem [shape: f32[1,128], index: 4, kind: input, shape index: {}]
  %s5 = inlined_call_operand.hbm [shape: bf16[16,128], index: 5, kind: output, shape index: {}]
  %s6 = sld [smem:[#allocation0]]
  $region42: #{tpu_custom_call.1} parent=0
    _
  %s8 = ssub.s32 1, %s6
  %s9 = scalar_select 0, %s8, %s6
  $region1: #{tpu_custom_call.1} parent=0
    #allocation2 [shape = 'u8[8192]{0}', space=vmem, size = 0x2000, scoped, tag = 'input window, operand 0, single buffered']
    #allocation3 [shape = 's32[1]{0}', space=sflag, size = 0x4, scoped, tag = 'scoped memory for tpu_custom_call.1']
    #allocation4 [shape = 's32[1]{0}', space=sflag, size = 0x4, scoped, tag = 'scoped memory for tpu_custom_call.1']
    #allocation5 [shape = 'u8[12288]{0}', space=vmem, size = 0x3000, scoped, tag = 'input window, operand 1, single buffered']
    #allocation6 [shape = 's32[1]{0}', space=sflag, size = 0x4, scoped, tag = 'scoped memory for tpu_custom_call.1']
    #allocation7 [shape = 'u8[32768]{0}', space=vmem, size = 0x8000, scoped, tag = 'input window, operand 3, single buffered']
    #allocation8 [shape = 'u8[4096]{0}', space=vmem, size = 0x1000, scoped, tag = 'output window, operand 0, single buffered']
    %10 = vsyncpa [#allocation3], 0
    %11 = vsyncpa [#allocation6], 0
    %12 = vsyncpa [#allocation4], 0
    // Predicated region
    $region2: #{tpu_custom_call.1} parent=1 // pred_check
      _
    $region3: #{tpu_custom_call.1} parent=1 // pred_check_branch
      %14 = sbr.rel (0) target = $region5
    $region4: #{tpu_custom_call.1} parent=1 // pred_region
      %16 = vsyncadd [#allocation3], 0
      %s17 = sshll.u32 %s0, 4
      %s18 = int_to_ptr.hbm [resolvable:$true] %s17
      %s19 = sshll.u32 [#allocation2], 4
      %s20 = int_to_ptr.vmem [resolvable:$true] %s19
      %25 = dma.hbm_to_vmem [thread:$0]  %s18, 256, %s20, [#allocation3], 128, 128, 8
    $region5: #{tpu_custom_call.1} parent=1 // pred_fallthru
      _
    // Predicated region
    $region6: #{tpu_custom_call.1} parent=1 // pred_check
      _
    $region7: #{tpu_custom_call.1} parent=1 // pred_check_branch
      %27 = sbr.rel (0) target = $region9
    $region8: #{tpu_custom_call.1} parent=1 // pred_region
      %29 = vsyncadd [#allocation6], 0
      %s30 = sshll.u32 %s1, 4
      %s31 = int_to_ptr.hbm [resolvable:$true] %s30
      %s32 = sshll.u32 [#allocation5], 4
      %s33 = int_to_ptr.vmem [resolvable:$true] %s32
      %38 = dma.hbm_to_vmem [thread:$0]  %s31, 384, %s33, [#allocation6], 64, 64, 4
    $region9: #{tpu_custom_call.1} parent=1 // pred_fallthru
      _
    // Predicated region
    $region10: #{tpu_custom_call.1} parent=1 // pred_check
      _
    $region11: #{tpu_custom_call.1} parent=1 // pred_check_branch
      %40 = sbr.rel (0) target = $region13
    $region12: #{tpu_custom_call.1} parent=1 // pred_region
      _
    $region13: #{tpu_custom_call.1} parent=1 // pred_fallthru
      _
    // Predicated region
    $region14: #{tpu_custom_call.1} parent=1 // pred_check
      _
    $region15: #{tpu_custom_call.1} parent=1 // pred_check_branch
      %42 = sbr.rel (0) target = $region17
    $region16: #{tpu_custom_call.1} parent=1 // pred_region
      %44 = vsyncadd [#allocation6], 0
      %s45 = sshll.u32 %s3, 4
      %s46 = int_to_ptr.hbm [resolvable:$true] %s45
      %s47 = sshll.u32 [#allocation7], 4
      %s48 = int_to_ptr.vmem [resolvable:$true] %s47
      %53 = dma.hbm_to_vmem [thread:$0]  %s46, 1024, %s48, [#allocation6], 64, 64, 4
    $region17: #{tpu_custom_call.1} parent=1 // pred_fallthru
      _
    // Predicated region
    $region18: #{tpu_custom_call.1} parent=1 // pred_check
      _
    $region19: #{tpu_custom_call.1} parent=1 // pred_check_branch
      %55 = sbr.rel (0) target = $region21
    $region20: #{tpu_custom_call.1} parent=1 // pred_region
      _
    $region21: #{tpu_custom_call.1} parent=1 // pred_fallthru
      _
    // Predicated region
    $region22: #{tpu_custom_call.1} parent=1 // pred_check
      _
    $region23: #{tpu_custom_call.1} parent=1 // pred_check_branch
      %57 = sbr.rel (0) target = $region25
    $region24: #{tpu_custom_call.1} parent=1 // pred_region
      %59 = dma.done [#allocation3], 256
    $region25: #{tpu_custom_call.1} parent=1 // pred_fallthru
      _
    // Predicated region
    $region26: #{tpu_custom_call.1} parent=1 // pred_check
      _
    $region27: #{tpu_custom_call.1} parent=1 // pred_check_branch
      %61 = sbr.rel (0) target = $region29
    $region28: #{tpu_custom_call.1} parent=1 // pred_region
      %63 = dma.done [#allocation6], 384
    $region29: #{tpu_custom_call.1} parent=1 // pred_fallthru
      _
    // Predicated region
    $region30: #{tpu_custom_call.1} parent=1 // pred_check
      _
    $region31: #{tpu_custom_call.1} parent=1 // pred_check_branch
      %65 = sbr.rel (0) target = $region33
    $region32: #{tpu_custom_call.1} parent=1 // pred_region
      %67 = dma.done [#allocation6], 1024
    $region33: #{tpu_custom_call.1} parent=1 // pred_fallthru
      _
    %v69 = vld [vmem:[#allocation2] sm:$0xff]
    %v70 = vld [vmem:[#allocation2 + $0x8] sm:$0xff]
    %v71 = vpack.c.bf16 %v70, %v69
    %v72 = vld [vmem:[#allocation5] sm:$0xf]
    %v73 = vld [vmem:[#allocation5 + $0x4] sm:$0xf]
    %v74 = vld [vmem:[#allocation5 + $0x8] sm:$0xf]
    %v75 = vld [vmem:[#allocation5 + $0xc] sm:$0xf]
    %v76 = vld [vmem:[#allocation5 + $0x10] sm:$0xf]
    %v77 = vld [vmem:[#allocation5 + $0x14] sm:$0xf]
    %v78 = vld [vmem:[%s2] sm:$0x1]
    %v80 = vperm.slane %v78, 0
    %v88 = vunpack.c.l.b16 %v72
    %v89 = vunpack.c.l.b16 %v73
    %v90 = vunpack.c.l.b16 %v74
    %v91 = vunpack.c.l.b16 %v75
    %v92 = vunpack.c.l.b16 %v76
    %v93 = vunpack.c.l.b16 %v77
    %v94 = vpack.c.b16 %v89, %v88
    %v95 = vpack.c.b16 %v91, %v90
    %v96 = vpack.c.b16 %v93, %v92
    %vm100 = vcmask 392192
    %v102 = vsel %vm100, %v71, 0
    %104 = vmatpush.bf16.msra.mxu0 0
    %105 = vmatpush.bf16.msra.mxu0 0
    %106 = vmatpush.bf16.msra.mxu0 0
    %107 = vmatpush.bf16.msra.mxu0 0
    %108 = vmatpush.bf16.msra.mxu0 0
    %109 = vmatpush.bf16.msra.mxu0 %v96
    %110 = vmatpush.bf16.msra.mxu0 %v95
    %111 = vmatpush.bf16.msra.mxu0 %v94
    %112 = vmatmul.bf16.gmra.mxu0 %v102
    %v113 = vpop.f32.mrf.mxu0
    %v114 = vadd.f32 %v80, %v113
    %v115 = vpop.f32.mrf.mxu0
    %v116 = vadd.f32 %v80, %v115
    %117 = vdwg.mxu0
    %v118 = vmax.f32 %v114, 0.0
    %v119 = vmax.f32 %v116, 0.0
    %v120 = vpack.c.bf16 %v119, %v118
    %v121 = vld [vmem:[#allocation7] sm:$0xf]
    %v122 = vld [vmem:[#allocation7 + $0x4] sm:$0xf]
    %v123 = vld [vmem:[#allocation7 + $0x8] sm:$0xf]
    %v124 = vld [vmem:[#allocation7 + $0xc] sm:$0xf]
    %v125 = vld [vmem:[#allocation7 + $0x10] sm:$0xf]
    %v126 = vld [vmem:[#allocation7 + $0x14] sm:$0xf]
    %v127 = vld [vmem:[#allocation7 + $0x18] sm:$0xf]
    %v128 = vld [vmem:[#allocation7 + $0x1c] sm:$0xf]
    %v129 = vld [vmem:[#allocation7 + $0x20] sm:$0xf]
    %v130 = vld [vmem:[#allocation7 + $0x24] sm:$0xf]
    %v131 = vld [vmem:[#allocation7 + $0x28] sm:$0xf]
    %v132 = vld [vmem:[#allocation7 + $0x2c] sm:$0xf]
    %v133 = vld [vmem:[#allocation7 + $0x30] sm:$0xf]
    %v134 = vld [vmem:[#allocation7 + $0x34] sm:$0xf]
    %v135 = vld [vmem:[#allocation7 + $0x38] sm:$0xf]
    %v136 = vld [vmem:[#allocation7 + $0x3c] sm:$0xf]
    %v137 = vld [vmem:[%s4] sm:$0x1]
    %v139 = vperm.slane %v137, 0
    %v157 = vunpack.c.l.b16 %v121
    %v158 = vunpack.c.l.b16 %v122
    %v159 = vunpack.c.l.b16 %v123
    %v160 = vunpack.c.l.b16 %v124
    %v161 = vunpack.c.l.b16 %v125
    %v162 = vunpack.c.l.b16 %v126
    %v163 = vunpack.c.l.b16 %v127
    %v164 = vunpack.c.l.b16 %v128
    %v165 = vunpack.c.l.b16 %v129
    %v166 = vunpack.c.l.b16 %v130
    %v167 = vunpack.c.l.b16 %v131
    %v168 = vunpack.c.l.b16 %v132
    %v169 = vunpack.c.l.b16 %v133
    %v170 = vunpack.c.l.b16 %v134
    %v171 = vunpack.c.l.b16 %v135
    %v172 = vunpack.c.l.b16 %v136
    %v173 = vpack.c.b16 %v158, %v157
    %v174 = vpack.c.b16 %v160, %v159
    %v175 = vpack.c.b16 %v162, %v161
    %v176 = vpack.c.b16 %v164, %v163
    %v177 = vpack.c.b16 %v166, %v165
    %v178 = vpack.c.b16 %v168, %v167
    %v179 = vpack.c.b16 %v170, %v169
    %v180 = vpack.c.b16 %v172, %v171
    %189 = vmatpush.bf16.msra.mxu0 %v180
    %190 = vmatpush.bf16.msra.mxu0 %v179
    %191 = vmatpush.bf16.msra.mxu0 %v178
    %192 = vmatpush.bf16.msra.mxu0 %v177
    %193 = vmatpush.bf16.msra.mxu0 %v176
    %194 = vmatpush.bf16.msra.mxu0 %v175
    %195 = vmatpush.bf16.msra.mxu0 %v174
    %196 = vmatpush.bf16.msra.mxu0 %v173
    %197 = vmatmul.bf16.gmra.mxu0 %v120
    %v198 = vpop.f32.mrf.mxu0
    %v199 = vadd.f32 %v139, %v198
    %v200 = vpop.f32.mrf.mxu0
    %v201 = vadd.f32 %v139, %v200
    %202 = vdwg.mxu0
    %v203 = vmax.f32 %v199, 0.0
    %v204 = vmax.f32 %v201, 0.0
    %v205 = vpack.c.bf16 %v203, %v203
    %v206 = vpack.c.bf16 %v204, %v204
    %207 = vst [vmem:[#allocation8] sm:$0xf] %v205
    %208 = vst [vmem:[#allocation8 + $0x4] sm:$0xf] %v206
    // Predicated region
    $region34: #{tpu_custom_call.1} parent=1 // pred_check
      _
    $region35: #{tpu_custom_call.1} parent=1 // pred_check_branch
      %210 = sbr.rel (0) target = $region37
    $region36: #{tpu_custom_call.1} parent=1 // pred_region
      %212 = vsyncadd [#allocation4], 0
      %s213 = sshll.u32 [#allocation8], 4
      %s214 = int_to_ptr.vmem [resolvable:$true] %s213
      %s215 = sshll.u32 %s5, 4
      %s216 = int_to_ptr.hbm [resolvable:$true] %s215
      %221 = dma.vmem_to_hbm [thread:$0]  %s214, 128, %s216, [#allocation4], 64, 64, 4
    $region37: #{tpu_custom_call.1} parent=1 // pred_fallthru
      _
    // Predicated region
    $region38: #{tpu_custom_call.1} parent=1 // pred_check
      _
    $region39: #{tpu_custom_call.1} parent=1 // pred_check_branch
      %223 = sbr.rel (0) target = $region41
    $region40: #{tpu_custom_call.1} parent=1 // pred_region
      %225 = dma.done [#allocation4], 128
    $region41: #{tpu_custom_call.1} parent=1 // pred_fallthru
      _
    %226 = vsyncpa [#allocation3], 1
    %227 = vsyncpa [#allocation6], 1
    %228 = vsyncpa [#allocation4], 1

</llo_original>
